<compile_context>
chip_gen: v5e
topology: v5e:2x2
jax: 0.10.0
libtpu: 0.0.40
codegen_flags: <defaults>
</compile_context>

<pallas_src>
import functools

import jax
import jax.numpy as jnp
from jax.experimental import pallas as pl
from jax.experimental.pallas import tpu as pltpu

BN_EPS = 1e-5
H1, H2 = 256, 512


def _round_up(x, m):
    return ((x + m - 1) // m) * m


# ----------------------------------------------------------------------------
# Kernel: one batch tile of the full 3-layer MLP (BN already folded in).
# ----------------------------------------------------------------------------
def meta_learner_kernel(x_ref,
                        w1_ref, b1_ref,
                        w2_ref, b2_ref,
                        w3_ref, b3_ref,
                        o_ref):
    x = x_ref[...].astype(jnp.bfloat16)                       # (TB, F)

    # Linear(input_dim, 256) [+ folded BN1] + ReLU  (Dropout = identity, eval)
    h = jnp.dot(x, w1_ref[...], preferred_element_type=jnp.float32)
    h = jnp.maximum(h + b1_ref[...], 0.0).astype(jnp.bfloat16)

    # Linear(256, 512) [+ folded BN2] + ReLU
    h = jnp.dot(h, w2_ref[...], preferred_element_type=jnp.float32)
    h = jnp.maximum(h + b2_ref[...], 0.0).astype(jnp.bfloat16)

    # Linear(512, output_dim)
    out = jnp.dot(h, w3_ref[...], preferred_element_type=jnp.float32)
    o_ref[...] = out + b3_ref[...]                            # (TB, OUT) f32


# ----------------------------------------------------------------------------
# Parameter prep: fold eval-mode BN into the Linear, cast matmul weights bf16.
# (No lane padding of w1 input rows or w3 output cols — shapes stay true.)
# ----------------------------------------------------------------------------
def _fold_bn(w, b, gamma, beta, mean, var, eps=BN_EPS):
    scale = gamma / jnp.sqrt(var + eps)                       # (N,)
    return w * scale[None, :], (b - mean) * scale + beta


def prepare_params(params):
    output_dim = params["w3"].shape[1]

    w1, b1 = _fold_bn(params["w1"], params["b1"], params["g1"], params["be1"],
                      params["rm1"], params["rv1"])
    w2, b2 = _fold_bn(params["w2"], params["b2"], params["g2"], params["be2"],
                      params["rm2"], params["rv2"])
    w3, b3 = params["w3"], params["b3"]

    return {
        "w1": w1.astype(jnp.bfloat16),                        # (F, 256)
        "b1": b1.reshape(1, H1).astype(jnp.float32),
        "w2": w2.astype(jnp.bfloat16),                        # (256, 512)
        "b2": b2.reshape(1, H2).astype(jnp.float32),
        "w3": w3.astype(jnp.bfloat16),                        # (512, OUT)
        "b3": b3.reshape(1, output_dim).astype(jnp.float32),
    }


def _choose_batch_tile(B, tb):
    """Batch tile: multiple of 8, <= tb, and >=2 grid steps when possible."""
    if B <= 8:
        return B                          # single full-dim tile (always legal)
    TB = min(_round_up(tb, 8), _round_up(B, 8))
    if pl.cdiv(B, TB) < 2:                # split so both v7x TCs get work
        TB = _round_up(pl.cdiv(B, 2), 8)
    return TB


# ----------------------------------------------------------------------------
# Wrapper: batch-tiled grid, weights VMEM-resident, no padding of x/out.
# ----------------------------------------------------------------------------
@functools.partial(jax.jit, static_argnames=("tb",))
def meta_learner_forward(x, prepped, *, tb=1024):
    B, F = x.shape
    output_dim = prepped["w3"].shape[1]

    TB = _choose_batch_tile(B, tb)
    grid = (pl.cdiv(B, TB),)              # partial final tile handled by Pallas

    def resident(shape):                  # constant index map -> stays in VMEM
        return pl.BlockSpec(shape, lambda i: (0, 0))

    return pl.pallas_call(
        meta_learner_kernel,
        out_shape=jax.ShapeDtypeStruct((B, output_dim), jnp.float32),
        grid=grid,
        in_specs=[
            pl.BlockSpec((TB, F), lambda i: (i, 0)),          # x (true last dim)
            resident(prepped["w1"].shape),
            resident(prepped["b1"].shape),
            resident(prepped["w2"].shape),
            resident(prepped["b2"].shape),
            resident(prepped["w3"].shape),
            resident(prepped["b3"].shape),
        ],
        out_specs=pl.BlockSpec((TB, output_dim), lambda i: (i, 0)),
        compiler_params=pltpu.CompilerParams(
            dimension_semantics=("parallel",),
            vmem_limit_bytes=32 * 1024 * 1024),
    )(x, prepped["w1"], prepped["b1"], prepped["w2"], prepped["b2"],
      prepped["w3"], prepped["b3"])


# ----------------------------------------------------------------------------
# Synthetic parameters (torch-shaped semantics; weights stored (in, out)).
# ----------------------------------------------------------------------------
def init_params(key, input_dim, output_dim):
    k = jax.random.split(key, 10)
    scale = 0.05
    return {
        "w1": scale * jax.random.normal(k[0], (input_dim, H1), jnp.float32),
        "b1": scale * jax.random.normal(k[1], (H1,), jnp.float32),
        "g1": 1.0 + 0.1 * jax.random.normal(k[2], (H1,), jnp.float32),
        "be1": 0.1 * jax.random.normal(k[3], (H1,), jnp.float32),
        "rm1": 0.1 * jax.random.normal(k[4], (H1,), jnp.float32),
        "rv1": jax.random.uniform(k[5], (H1,), jnp.float32, 0.5, 1.5),
        "w2": scale * jax.random.normal(k[6], (H1, H2), jnp.float32),
        "b2": scale * jax.random.normal(k[7], (H2,), jnp.float32),
        "g2": jnp.ones((H2,), jnp.float32),
        "be2": jnp.zeros((H2,), jnp.float32),
        "rm2": jnp.zeros((H2,), jnp.float32),
        "rv2": jnp.ones((H2,), jnp.float32),
        "w3": scale * jax.random.normal(k[8], (H2, output_dim), jnp.float32),
        "b3": scale * jax.random.normal(k[9], (output_dim,), jnp.float32),
    }


def reference_forward(x, params):
    """Plain-JAX eval-mode reference (BN with running stats, un-folded, f32)."""
    def bn(h, g, b, m, v):
        return g * (h - m) / jnp.sqrt(v + BN_EPS) + b

    h = x @ params["w1"] + params["b1"]
    h = jnp.maximum(bn(h, params["g1"], params["be1"], params["rm1"], params["rv1"]), 0.0)
    h = h @ params["w2"] + params["b2"]
    h = jnp.maximum(bn(h, params["g2"], params["be2"], params["rm2"], params["rv2"]), 0.0)
    return h @ params["w3"] + params["b3"]


if __name__ == "__main__":
    key = jax.random.PRNGKey(0)
    kx, kp = jax.random.split(key)

    batch = 8
    input_dim = 16     # stacked base-model predictions
    output_dim = 4

    x = jax.random.normal(kx, (batch, input_dim), jnp.float32)
    params = init_params(kp, input_dim, output_dim)
    prepped = prepare_params(params)

    out = meta_learner_forward(x, prepped)
    out = jax.block_until_ready(out)

    ref = reference_forward(x, params)
    assert out.shape == (batch, output_dim)
    assert jnp.allclose(out, ref, atol=2e-2, rtol=2e-2), "mismatch vs JAX reference"

    print("KERNEL_OK")
</pallas_src>

<mosaic_0001>
module attributes {stable_mosaic.version = 11 : i64} {
  func.func @meta_learner_kernel(%arg0: i32, %arg1: memref<8x16xf32, #tpu.memory_space<vmem>>, %arg2: memref<16x256xbf16, #tpu.memory_space<vmem>>, %arg3: memref<1x256xf32, #tpu.memory_space<vmem>>, %arg4: memref<256x512xbf16, #tpu.memory_space<vmem>>, %arg5: memref<1x512xf32, #tpu.memory_space<vmem>>, %arg6: memref<512x4xbf16, #tpu.memory_space<vmem>>, %arg7: memref<1x4xf32, #tpu.memory_space<vmem>>, %arg8: memref<8x4xf32, #tpu.memory_space<vmem>>) attributes {dimension_semantics = [#tpu.dimension_semantics<parallel>], iteration_bounds = array<i64: 1>, scalar_prefetch = 0 : i64, scratch_operands = 0 : i64, tpu.core_type = #tpu.core_type<tc>, window_params = [{transform_indices = @transform_0, window_bounds = array<i64: 8, 16>}, {pipeline_mode = #tpu.pipeline_mode<synchronous>, transform_indices = @transform_1, window_bounds = array<i64: 16, 256>}, {pipeline_mode = #tpu.pipeline_mode<synchronous>, transform_indices = @transform_2, window_bounds = array<i64: 1, 256>}, {pipeline_mode = #tpu.pipeline_mode<synchronous>, transform_indices = @transform_3, window_bounds = array<i64: 256, 512>}, {pipeline_mode = #tpu.pipeline_mode<synchronous>, transform_indices = @transform_4, window_bounds = array<i64: 1, 512>}, {pipeline_mode = #tpu.pipeline_mode<synchronous>, transform_indices = @transform_5, window_bounds = array<i64: 512, 4>}, {pipeline_mode = #tpu.pipeline_mode<synchronous>, transform_indices = @transform_6, window_bounds = array<i64: 1, 4>}, {transform_indices = @transform_7, window_bounds = array<i64: 8, 4>}]} {
    %c0 = arith.constant 0 : index
    %c0_0 = arith.constant 0 : index
    %0 = vector.load %arg1[%c0, %c0_0] : memref<8x16xf32, #tpu.memory_space<vmem>>, vector<8x16xf32>
    %1 = arith.truncf %0 : vector<8x16xf32> to vector<8x16xbf16>
    %c0_1 = arith.constant 0 : index
    %c0_2 = arith.constant 0 : index
    %2 = vector.load %arg2[%c0_1, %c0_2] : memref<16x256xbf16, #tpu.memory_space<vmem>>, vector<16x256xbf16>
    %cst = arith.constant dense<0.000000e+00> : vector<8x256xf32>
    %3 = tpu.matmul %1, %2, %cst {dimension_numbers = #tpu.dot_dimension_numbers<[1], [0], [0], [1], [0, 0, 1, 1], [], []>} : vector<8x16xbf16>, vector<16x256xbf16>, vector<8x256xf32> -> vector<8x256xf32>
    %c0_3 = arith.constant 0 : index
    %c0_4 = arith.constant 0 : index
    %4 = vector.load %arg3[%c0_3, %c0_4] : memref<1x256xf32, #tpu.memory_space<vmem>>, vector<1x256xf32>
    %5 = vector.broadcast %4 : vector<1x256xf32> to vector<8x256xf32>
    %6 = arith.addf %3, %5 : vector<8x256xf32>
    %cst_5 = arith.constant 0.000000e+00 : f32
    %7 = vector.broadcast %cst_5 : f32 to vector<8x256xf32>
    %8 = arith.maximumf %6, %7 : vector<8x256xf32>
    %9 = arith.truncf %8 : vector<8x256xf32> to vector<8x256xbf16>
    %c0_6 = arith.constant 0 : index
    %c0_7 = arith.constant 0 : index
    %10 = vector.load %arg4[%c0_6, %c0_7] : memref<256x512xbf16, #tpu.memory_space<vmem>>, vector<256x512xbf16>
    %cst_8 = arith.constant dense<0.000000e+00> : vector<8x512xf32>
    %11 = tpu.matmul %9, %10, %cst_8 {dimension_numbers = #tpu.dot_dimension_numbers<[1], [0], [0], [1], [0, 0, 1, 1], [], []>} : vector<8x256xbf16>, vector<256x512xbf16>, vector<8x512xf32> -> vector<8x512xf32>
    %c0_9 = arith.constant 0 : index
    %c0_10 = arith.constant 0 : index
    %12 = vector.load %arg5[%c0_9, %c0_10] : memref<1x512xf32, #tpu.memory_space<vmem>>, vector<1x512xf32>
    %13 = vector.broadcast %12 : vector<1x512xf32> to vector<8x512xf32>
    %14 = arith.addf %11, %13 : vector<8x512xf32>
    %cst_11 = arith.constant 0.000000e+00 : f32
    %15 = vector.broadcast %cst_11 : f32 to vector<8x512xf32>
    %16 = arith.maximumf %14, %15 : vector<8x512xf32>
    %17 = arith.truncf %16 : vector<8x512xf32> to vector<8x512xbf16>
    %c0_12 = arith.constant 0 : index
    %c0_13 = arith.constant 0 : index
    %18 = vector.load %arg6[%c0_12, %c0_13] : memref<512x4xbf16, #tpu.memory_space<vmem>>, vector<512x4xbf16>
    %cst_14 = arith.constant dense<0.000000e+00> : vector<8x4xf32>
    %19 = tpu.matmul %17, %18, %cst_14 {dimension_numbers = #tpu.dot_dimension_numbers<[1], [0], [0], [1], [0, 0, 1, 1], [], []>} : vector<8x512xbf16>, vector<512x4xbf16>, vector<8x4xf32> -> vector<8x4xf32>
    %c0_15 = arith.constant 0 : index
    %c0_16 = arith.constant 0 : index
    %20 = vector.load %arg7[%c0_15, %c0_16] : memref<1x4xf32, #tpu.memory_space<vmem>>, vector<1x4xf32>
    %21 = vector.broadcast %20 : vector<1x4xf32> to vector<8x4xf32>
    %22 = arith.addf %19, %21 : vector<8x4xf32>
    %c0_17 = arith.constant 0 : index
    %c0_18 = arith.constant 0 : index
    %23 = vector.load %arg8[%c0_17, %c0_18] : memref<8x4xf32, #tpu.memory_space<vmem>>, vector<8x4xf32>
    tpu.vector_store %arg8[%c0_17, %c0_18], %22 {strides = array<i32>} : memref<8x4xf32, #tpu.memory_space<vmem>>, vector<8x4xf32>,
    return
  }
  func.func @transform_0(%arg0: i32) -> (i32, i32) {
    %c0_i32 = arith.constant 0 : i32
    %c0_i32_0 = arith.constant 0 : i32
    return %arg0, %c0_i32 : i32, i32
  }
  func.func @transform_1(%arg0: i32) -> (i32, i32) {
    %c0_i32 = arith.constant 0 : i32
    %c0_i32_0 = arith.constant 0 : i32
    %c0_i32_1 = arith.constant 0 : i32
    return %c0_i32, %c0_i32_0 : i32, i32
  }
  func.func @transform_2(%arg0: i32) -> (i32, i32) {
    %c0_i32 = arith.constant 0 : i32
    %c0_i32_0 = arith.constant 0 : i32
    %c0_i32_1 = arith.constant 0 : i32
    return %c0_i32, %c0_i32_0 : i32, i32
  }
  func.func @transform_3(%arg0: i32) -> (i32, i32) {
    %c0_i32 = arith.constant 0 : i32
    %c0_i32_0 = arith.constant 0 : i32
    %c0_i32_1 = arith.constant 0 : i32
    return %c0_i32, %c0_i32_0 : i32, i32
  }
  func.func @transform_4(%arg0: i32) -> (i32, i32) {
    %c0_i32 = arith.constant 0 : i32
    %c0_i32_0 = arith.constant 0 : i32
    %c0_i32_1 = arith.constant 0 : i32
    return %c0_i32, %c0_i32_0 : i32, i32
  }
  func.func @transform_5(%arg0: i32) -> (i32, i32) {
    %c0_i32 = arith.constant 0 : i32
    %c0_i32_0 = arith.constant 0 : i32
    %c0_i32_1 = arith.constant 0 : i32
    return %c0_i32, %c0_i32_0 : i32, i32
  }
  func.func @transform_6(%arg0: i32) -> (i32, i32) {
    %c0_i32 = arith.constant 0 : i32
    %c0_i32_0 = arith.constant 0 : i32
    %c0_i32_1 = arith.constant 0 : i32
    return %c0_i32, %c0_i32_0 : i32, i32
  }
  func.func @transform_7(%arg0: i32) -> (i32, i32) {
    %c0_i32 = arith.constant 0 : i32
    %c0_i32_0 = arith.constant 0 : i32
    return %arg0, %c0_i32 : i32, i32
  }
}

</mosaic_0001>

<llo_original>
// kernel: meta_learner_forward.1
$region0: #{meta_learner_forward.1}
  #allocation0 [shape = 'u32[]', space=smem, size = 0x4, offset = 0x4, fixed_abs, tag = 'smem constant byte address 0x4 - core index']
  #allocation1 [shape = 'u32[72,128]{1,0:T(1,128)}', space=vmem, size = 0x9000, scoped, tag = 'internal scratch']
  %s0 = inlined_call_operand.vmem [shape: f32[8,16], index: 0, kind: input, shape index: {}]
  %s1 = inlined_call_operand.vmem [shape: bf16[16,256], index: 1, kind: input, shape index: {}]
  %s2 = inlined_call_operand.vmem [shape: f32[1,256], index: 2, kind: input, shape index: {}]
  %s3 = inlined_call_operand.hbm [shape: bf16[256,512], index: 3, kind: input, shape index: {}]
  %s4 = inlined_call_operand.vmem [shape: f32[1,512], index: 4, kind: input, shape index: {}]
  %s5 = inlined_call_operand.vmem [shape: bf16[512,4], index: 5, kind: input, shape index: {}]
  %s6 = inlined_call_operand.vmem [shape: f32[1,4], index: 6, kind: input, shape index: {}]
  %s7 = inlined_call_operand.vmem [shape: f32[8,4], index: 7, kind: output, shape index: {}]
  %s8 = sld [smem:[#allocation0]]
  $region42: #{meta_learner_forward.1} parent=0
    _
  %s10 = ssub.s32 1, %s8
  %s11 = scalar_select 0, %s10, %s8
  $region1: #{meta_learner_forward.1} parent=0
    #allocation2 [shape = 'u8[262144]{0}', space=vmem, size = 0x40000, scoped, tag = 'input window, operand 3, single buffered']
    #allocation3 [shape = 's32[1]{0}', space=sflag, size = 0x4, scoped, tag = 'scoped memory for meta_learner_forward.1']
    %12 = vsyncpa [#allocation3], 0
    // Predicated region
    $region2: #{meta_learner_forward.1} parent=1 // pred_check
      _
    $region3: #{meta_learner_forward.1} parent=1 // pred_check_branch
      %14 = sbr.rel (0) target = $region5
    $region4: #{meta_learner_forward.1} parent=1 // pred_region
      _
    $region5: #{meta_learner_forward.1} parent=1 // pred_fallthru
      _
    // Predicated region
    $region6: #{meta_learner_forward.1} parent=1 // pred_check
      _
    $region7: #{meta_learner_forward.1} parent=1 // pred_check_branch
      %16 = sbr.rel (0) target = $region9
    $region8: #{meta_learner_forward.1} parent=1 // pred_region
      _
    $region9: #{meta_learner_forward.1} parent=1 // pred_fallthru
      _
    // Predicated region
    $region10: #{meta_learner_forward.1} parent=1 // pred_check
      _
    $region11: #{meta_learner_forward.1} parent=1 // pred_check_branch
      %18 = sbr.rel (0) target = $region13
    $region12: #{meta_learner_forward.1} parent=1 // pred_region
      _
    $region13: #{meta_learner_forward.1} parent=1 // pred_fallthru
      _
    // Predicated region
    $region14: #{meta_learner_forward.1} parent=1 // pred_check
      _
    $region15: #{meta_learner_forward.1} parent=1 // pred_check_branch
      %20 = sbr.rel (0) target = $region17
    $region16: #{meta_learner_forward.1} parent=1 // pred_region
      %22 = vsyncadd [#allocation3], 0
      %s23 = sshll.u32 %s3, 4
      %s24 = int_to_ptr.hbm [resolvable:$true] %s23
      %s25 = sshll.u32 [#allocation2], 4
      %s26 = int_to_ptr.vmem [resolvable:$true] %s25
      %31 = dma.hbm_to_vmem [thread:$0]  %s24, 8192, %s26, [#allocation3], 256, 256, 16
    $region17: #{meta_learner_forward.1} parent=1 // pred_fallthru
      _
    // Predicated region
    $region18: #{meta_learner_forward.1} parent=1 // pred_check
      _
    $region19: #{meta_learner_forward.1} parent=1 // pred_check_branch
      %33 = sbr.rel (0) target = $region21
    $region20: #{meta_learner_forward.1} parent=1 // pred_region
      _
    $region21: #{meta_learner_forward.1} parent=1 // pred_fallthru
      _
    // Predicated region
    $region22: #{meta_learner_forward.1} parent=1 // pred_check
      _
    $region23: #{meta_learner_forward.1} parent=1 // pred_check_branch
      %35 = sbr.rel (0) target = $region25
    $region24: #{meta_learner_forward.1} parent=1 // pred_region
      _
    $region25: #{meta_learner_forward.1} parent=1 // pred_fallthru
      _
    // Predicated region
    $region26: #{meta_learner_forward.1} parent=1 // pred_check
      _
    $region27: #{meta_learner_forward.1} parent=1 // pred_check_branch
      %37 = sbr.rel (0) target = $region29
    $region28: #{meta_learner_forward.1} parent=1 // pred_region
      _
    $region29: #{meta_learner_forward.1} parent=1 // pred_fallthru
      _
    // Predicated region
    $region30: #{meta_learner_forward.1} parent=1 // pred_check
      _
    $region31: #{meta_learner_forward.1} parent=1 // pred_check_branch
      %39 = sbr.rel (0) target = $region33
    $region32: #{meta_learner_forward.1} parent=1 // pred_region
      %41 = dma.done [#allocation3], 8192
    $region33: #{meta_learner_forward.1} parent=1 // pred_fallthru
      _
    %v43 = vld [vmem:[%s0] sm:$0xff]
    %v44 = vpack.c.bf16 %v43, %v43
    %v45 = vld [vmem:[%s1] sm:$0xff]
    %v46 = vld [vmem:[%s1 + $0x8] sm:$0xff]
    %v47 = vld [vmem:[%s2] sm:$0x3]
    %v49 = vperm.slane %v47, 0
    %v50 = vperm.slane %v47, 1
    %v55 = vunpack.c.l.b16 %v45
    %v56 = vunpack.c.h.b16 %v45
    %v57 = vunpack.c.l.b16 %v46
    %v58 = vunpack.c.h.b16 %v46
    %v59 = vpack.c.b16 %v57, %v55
    %v60 = vpack.c.b16 %v58, %v56
    %vm63 = vcmask 130048
    %v65 = vsel %vm63, %v44, 0
    %67 = vmatpush.bf16.msra.mxu0 0
    %68 = vmatpush.bf16.msra.mxu0 0
    %69 = vmatpush.bf16.msra.mxu0 0
    %70 = vmatpush.bf16.msra.mxu0 0
    %71 = vmatpush.bf16.msra.mxu0 0
    %72 = vmatpush.bf16.msra.mxu0 0
    %73 = vmatpush.bf16.msra.mxu0 0
    %74 = vmatpush.bf16.msra.mxu0 %v59
    %75 = vmatmul.bf16.gmra.mxu0 %v65
    %v76 = vpop.f32.mrf.mxu0
    %v77 = vadd.f32 %v49, %v76
    %v78 = vpop.f32.mrf.mxu0
    %79 = vdwg.mxu0
    %80 = vmatpush.bf16.msra.mxu0 0
    %81 = vmatpush.bf16.msra.mxu0 0
    %82 = vmatpush.bf16.msra.mxu0 0
    %83 = vmatpush.bf16.msra.mxu0 0
    %84 = vmatpush.bf16.msra.mxu0 0
    %85 = vmatpush.bf16.msra.mxu0 0
    %86 = vmatpush.bf16.msra.mxu0 0
    %87 = vmatpush.bf16.msra.mxu0 %v60
    %88 = vmatmul.bf16.gmra.mxu0 %v65
    %v89 = vpop.f32.mrf.mxu0
    %v90 = vadd.f32 %v50, %v89
    %v91 = vpop.f32.mrf.mxu0
    %92 = vdwg.mxu0
    %v93 = vmax.f32 %v77, 0.0
    %v94 = vmax.f32 %v90, 0.0
    %v95 = vpack.c.bf16 %v93, %v93
    %v96 = vpack.c.bf16 %v94, %v94
    %v97 = vld [vmem:[#allocation2] sm:$0xff]
    %v98 = vld [vmem:[#allocation2 + $0x8] sm:$0xff]
    %v99 = vld [vmem:[#allocation2 + $0x10] sm:$0xff]
    %v100 = vld [vmem:[#allocation2 + $0x18] sm:$0xff]
    %v101 = vld [vmem:[#allocation2 + $0x20] sm:$0xff]
    %v102 = vld [vmem:[#allocation2 + $0x28] sm:$0xff]
    %v103 = vld [vmem:[#allocation2 + $0x30] sm:$0xff]
    %v104 = vld [vmem:[#allocation2 + $0x38] sm:$0xff]
    %v105 = vld [vmem:[#allocation2 + $0x40] sm:$0xff]
    %v106 = vld [vmem:[#allocation2 + $0x48] sm:$0xff]
    %v107 = vld [vmem:[#allocation2 + $0x50] sm:$0xff]
    %v108 = vld [vmem:[#allocation2 + $0x58] sm:$0xff]
    %v109 = vld [vmem:[#allocation2 + $0x60] sm:$0xff]
    %v110 = vld [vmem:[#allocation2 + $0x68] sm:$0xff]
    %v111 = vld [vmem:[#allocation2 + $0x70] sm:$0xff]
    %v112 = vld [vmem:[#allocation2 + $0x78] sm:$0xff]
    %v113 = vld [vmem:[#allocation2 + $0x80] sm:$0xff]
    %v114 = vld [vmem:[#allocation2 + $0x88] sm:$0xff]
    %v115 = vld [vmem:[#allocation2 + $0x90] sm:$0xff]
    %v116 = vld [vmem:[#allocation2 + $0x98] sm:$0xff]
    %v117 = vld [vmem:[#allocation2 + $0xa0] sm:$0xff]
    %v118 = vld [vmem:[#allocation2 + $0xa8] sm:$0xff]
    %v119 = vld [vmem:[#allocation2 + $0xb0] sm:$0xff]
    %v120 = vld [vmem:[#allocation2 + $0xb8] sm:$0xff]
    %v121 = vld [vmem:[#allocation2 + $0xc0] sm:$0xff]
    %v122 = vld [vmem:[#allocation2 + $0xc8] sm:$0xff]
    %v123 = vld [vmem:[#allocation2 + $0xd0] sm:$0xff]
    %v124 = vld [vmem:[#allocation2 + $0xd8] sm:$0xff]
    %v125 = vld [vmem:[#allocation2 + $0xe0] sm:$0xff]
    %v126 = vld [vmem:[#allocation2 + $0xe8] sm:$0xff]
    %v127 = vld [vmem:[#allocation2 + $0xf0] sm:$0xff]
    %v128 = vld [vmem:[#allocation2 + $0xf8] sm:$0xff]
    %v129 = vld [vmem:[#allocation2 + $0x100] sm:$0xff]
    %v130 = vld [vmem:[#allocation2 + $0x108] sm:$0xff]
    %v131 = vld [vmem:[#allocation2 + $0x110] sm:$0xff]
    %v132 = vld [vmem:[#allocation2 + $0x118] sm:$0xff]
    %v133 = vld [vmem:[#allocation2 + $0x120] sm:$0xff]
    %v134 = vld [vmem:[#allocation2 + $0x128] sm:$0xff]
    %v135 = vld [vmem:[#allocation2 + $0x130] sm:$0xff]
    %v136 = vld [vmem:[#allocation2 + $0x138] sm:$0xff]
    %v137 = vld [vmem:[#allocation2 + $0x140] sm:$0xff]
    %v138 = vld [vmem:[#allocation2 + $0x148] sm:$0xff]
    %v139 = vld [vmem:[#allocation2 + $0x150] sm:$0xff]
    %v140 = vld [vmem:[#allocation2 + $0x158] sm:$0xff]
    %v141 = vld [vmem:[#allocation2 + $0x160] sm:$0xff]
    %v142 = vld [vmem:[#allocation2 + $0x168] sm:$0xff]
    %v143 = vld [vmem:[#allocation2 + $0x170] sm:$0xff]
    %v144 = vld [vmem:[#allocation2 + $0x178] sm:$0xff]
    %v145 = vld [vmem:[#allocation2 + $0x180] sm:$0xff]
    %v146 = vld [vmem:[#allocation2 + $0x188] sm:$0xff]
    %v147 = vld [vmem:[#allocation2 + $0x190] sm:$0xff]
    %v148 = vld [vmem:[#allocation2 + $0x198] sm:$0xff]
    %v149 = vld [vmem:[#allocation2 + $0x1a0] sm:$0xff]
    %v150 = vld [vmem:[#allocation2 + $0x1a8] sm:$0xff]
    %v151 = vld [vmem:[#allocation2 + $0x1b0] sm:$0xff]
    %v152 = vld [vmem:[#allocation2 + $0x1b8] sm:$0xff]
    %v153 = vld [vmem:[#allocation2 + $0x1c0] sm:$0xff]
    %v154 = vld [vmem:[#allocation2 + $0x1c8] sm:$0xff]
    %v155 = vld [vmem:[#allocation2 + $0x1d0] sm:$0xff]
    %v156 = vld [vmem:[#allocation2 + $0x1d8] sm:$0xff]
    %v157 = vld [vmem:[#allocation2 + $0x1e0] sm:$0xff]
    %v158 = vld [vmem:[#allocation2 + $0x1e8] sm:$0xff]
    %v159 = vld [vmem:[#allocation2 + $0x1f0] sm:$0xff]
    %v160 = vld [vmem:[#allocation2 + $0x1f8] sm:$0xff]
    %v161 = vld [vmem:[%s4] sm:$0xf]
    %v163 = vperm.slane %v161, 0
    %v164 = vperm.slane %v161, 1
    %v165 = vperm.slane %v161, 2
    %v166 = vperm.slane %v161, 3
    %v235 = vunpack.c.l.b16 %v97
    %v236 = vunpack.c.h.b16 %v97
    %v237 = vunpack.c.l.b16 %v98
    %v238 = vunpack.c.h.b16 %v98
    %v239 = vunpack.c.l.b16 %v99
    %v240 = vunpack.c.h.b16 %v99
    %v241 = vunpack.c.l.b16 %v100
    %v242 = vunpack.c.h.b16 %v100
    %v243 = vunpack.c.l.b16 %v101
    %v244 = vunpack.c.h.b16 %v101
    %v245 = vunpack.c.l.b16 %v102
    %v246 = vunpack.c.h.b16 %v102
    %v247 = vunpack.c.l.b16 %v103
    %v248 = vunpack.c.h.b16 %v103
    %v249 = vunpack.c.l.b16 %v104
    %v250 = vunpack.c.h.b16 %v104
    %v251 = vunpack.c.l.b16 %v105
    %v252 = vunpack.c.h.b16 %v105
    %v253 = vunpack.c.l.b16 %v106
    %v254 = vunpack.c.h.b16 %v106
    %v255 = vunpack.c.l.b16 %v107
    %v256 = vunpack.c.h.b16 %v107
    %v257 = vunpack.c.l.b16 %v108
    %v258 = vunpack.c.h.b16 %v108
    %v259 = vunpack.c.l.b16 %v109
    %v260 = vunpack.c.h.b16 %v109
    %v261 = vunpack.c.l.b16 %v110
    %v262 = vunpack.c.h.b16 %v110
    %v263 = vunpack.c.l.b16 %v111
    %v264 = vunpack.c.h.b16 %v111
    %v265 = vunpack.c.l.b16 %v112
    %v266 = vunpack.c.h.b16 %v112
    %v267 = vunpack.c.l.b16 %v113
    %v268 = vunpack.c.h.b16 %v113
    %v269 = vunpack.c.l.b16 %v114
    %v270 = vunpack.c.h.b16 %v114
    %v271 = vunpack.c.l.b16 %v115
    %v272 = vunpack.c.h.b16 %v115
    %v273 = vunpack.c.l.b16 %v116
    %v274 = vunpack.c.h.b16 %v116
    %v275 = vunpack.c.l.b16 %v117
    %v276 = vunpack.c.h.b16 %v117
    %v277 = vunpack.c.l.b16 %v118
    %v278 = vunpack.c.h.b16 %v118
    %v279 = vunpack.c.l.b16 %v119
    %v280 = vunpack.c.h.b16 %v119
    %v281 = vunpack.c.l.b16 %v120
    %v282 = vunpack.c.h.b16 %v120
    %v283 = vunpack.c.l.b16 %v121
    %v284 = vunpack.c.h.b16 %v121
    %v285 = vunpack.c.l.b16 %v122
    %v286 = vunpack.c.h.b16 %v122
    %v287 = vunpack.c.l.b16 %v123
    %v288 = vunpack.c.h.b16 %v123
    %v289 = vunpack.c.l.b16 %v124
    %v290 = vunpack.c.h.b16 %v124
    %v291 = vunpack.c.l.b16 %v125
    %v292 = vunpack.c.h.b16 %v125
    %v293 = vunpack.c.l.b16 %v126
    %v294 = vunpack.c.h.b16 %v126
    %v295 = vunpack.c.l.b16 %v127
    %v296 = vunpack.c.h.b16 %v127
    %v297 = vunpack.c.l.b16 %v128
    %v298 = vunpack.c.h.b16 %v128
    %v299 = vunpack.c.l.b16 %v129
    %v300 = vunpack.c.h.b16 %v129
    %v301 = vunpack.c.l.b16 %v130
    %v302 = vunpack.c.h.b16 %v130
    %v303 = vunpack.c.l.b16 %v131
    %v304 = vunpack.c.h.b16 %v131
    %v305 = vunpack.c.l.b16 %v132
    %v306 = vunpack.c.h.b16 %v132
    %v307 = vunpack.c.l.b16 %v133
    %v308 = vunpack.c.h.b16 %v133
    %v309 = vunpack.c.l.b16 %v134
    %v310 = vunpack.c.h.b16 %v134
    %v311 = vunpack.c.l.b16 %v135
    %v312 = vunpack.c.h.b16 %v135
    %v313 = vunpack.c.l.b16 %v136
    %v314 = vunpack.c.h.b16 %v136
    %v315 = vunpack.c.l.b16 %v137
    %v316 = vunpack.c.h.b16 %v137
    %v317 = vunpack.c.l.b16 %v138
    %v318 = vunpack.c.h.b16 %v138
    %v319 = vunpack.c.l.b16 %v139
    %v320 = vunpack.c.h.b16 %v139
    %v321 = vunpack.c.l.b16 %v140
    %v322 = vunpack.c.h.b16 %v140
    %v323 = vunpack.c.l.b16 %v141
    %v324 = vunpack.c.h.b16 %v141
    %v325 = vunpack.c.l.b16 %v142
    %v326 = vunpack.c.h.b16 %v142
    %v327 = vunpack.c.l.b16 %v143
    %v328 = vunpack.c.h.b16 %v143
    %v329 = vunpack.c.l.b16 %v144
    %v330 = vunpack.c.h.b16 %v144
    %v331 = vunpack.c.l.b16 %v145
    %v332 = vunpack.c.h.b16 %v145
    %v333 = vunpack.c.l.b16 %v146
    %v334 = vunpack.c.h.b16 %v146
    %v335 = vunpack.c.l.b16 %v147
    %v336 = vunpack.c.h.b16 %v147
    %v337 = vunpack.c.l.b16 %v148
    %v338 = vunpack.c.h.b16 %v148
    %v339 = vunpack.c.l.b16 %v149
    %v340 = vunpack.c.h.b16 %v149
    %v341 = vunpack.c.l.b16 %v150
    %v342 = vunpack.c.h.b16 %v150
    %v343 = vunpack.c.l.b16 %v151
    %v344 = vunpack.c.h.b16 %v151
    %v345 = vunpack.c.l.b16 %v152
    %v346 = vunpack.c.h.b16 %v152
    %v347 = vunpack.c.l.b16 %v153
    %v348 = vunpack.c.h.b16 %v153
    %v349 = vunpack.c.l.b16 %v154
    %v350 = vunpack.c.h.b16 %v154
    %v351 = vunpack.c.l.b16 %v155
    %v352 = vunpack.c.h.b16 %v155
    %v353 = vunpack.c.l.b16 %v156
    %v354 = vunpack.c.h.b16 %v156
    %v355 = vunpack.c.l.b16 %v157
    %v356 = vunpack.c.h.b16 %v157
    %v357 = vunpack.c.l.b16 %v158
    %v358 = vunpack.c.h.b16 %v158
    %v359 = vunpack.c.l.b16 %v159
    %v360 = vunpack.c.h.b16 %v159
    %v361 = vunpack.c.l.b16 %v160
    %v362 = vunpack.c.h.b16 %v160
    %v363 = vpack.c.b16 %v239, %v235
    %v364 = vpack.c.b16 %v240, %v236
    %v365 = vpack.c.b16 %v241, %v237
    %v366 = vpack.c.b16 %v242, %v238
    %v367 = vpack.c.b16 %v247, %v243
    %v368 = vpack.c.b16 %v248, %v244
    %v369 = vpack.c.b16 %v249, %v245
    %v370 = vpack.c.b16 %v250, %v246
    %v371 = vpack.c.b16 %v255, %v251
    %v372 = vpack.c.b16 %v256, %v252
    %v373 = vpack.c.b16 %v257, %v253
    %v374 = vpack.c.b16 %v258, %v254
    %v375 = vpack.c.b16 %v263, %v259
    %v376 = vpack.c.b16 %v264, %v260
    %v377 = vpack.c.b16 %v265, %v261
    %v378 = vpack.c.b16 %v266, %v262
    %v379 = vpack.c.b16 %v271, %v267
    %v380 = vpack.c.b16 %v272, %v268
    %v381 = vpack.c.b16 %v273, %v269
    %v382 = vpack.c.b16 %v274, %v270
    %v383 = vpack.c.b16 %v279, %v275
    %v384 = vpack.c.b16 %v280, %v276
    %v385 = vpack.c.b16 %v281, %v277
    %v386 = vpack.c.b16 %v282, %v278
    %v387 = vpack.c.b16 %v287, %v283
    %v388 = vpack.c.b16 %v288, %v284
    %v389 = vpack.c.b16 %v289, %v285
    %v390 = vpack.c.b16 %v290, %v286
    %v391 = vpack.c.b16 %v295, %v291
    %v392 = vpack.c.b16 %v296, %v292
    %v393 = vpack.c.b16 %v297, %v293
    %v394 = vpack.c.b16 %v298, %v294
    %v395 = vpack.c.b16 %v303, %v299
    %v396 = vpack.c.b16 %v304, %v300
    %v397 = vpack.c.b16 %v305, %v301
    %v398 = vpack.c.b16 %v306, %v302
    %v399 = vpack.c.b16 %v311, %v307
    %v400 = vpack.c.b16 %v312, %v308
    %v401 = vpack.c.b16 %v313, %v309
    %v402 = vpack.c.b16 %v314, %v310
    %v403 = vpack.c.b16 %v319, %v315
    %v404 = vpack.c.b16 %v320, %v316
    %v405 = vpack.c.b16 %v321, %v317
    %v406 = vpack.c.b16 %v322, %v318
    %v407 = vpack.c.b16 %v327, %v323
    %v408 = vpack.c.b16 %v328, %v324
    %v409 = vpack.c.b16 %v329, %v325
    %v410 = vpack.c.b16 %v330, %v326
    %v411 = vpack.c.b16 %v335, %v331
    %v412 = vpack.c.b16 %v336, %v332
    %v413 = vpack.c.b16 %v337, %v333
    %v414 = vpack.c.b16 %v338, %v334
    %v415 = vpack.c.b16 %v343, %v339
    %v416 = vpack.c.b16 %v344, %v340
    %v417 = vpack.c.b16 %v345, %v341
    %v418 = vpack.c.b16 %v346, %v342
    %v419 = vpack.c.b16 %v351, %v347
    %v420 = vpack.c.b16 %v352, %v348
    %v421 = vpack.c.b16 %v353, %v349
    %v422 = vpack.c.b16 %v354, %v350
    %v423 = vpack.c.b16 %v359, %v355
    %v424 = vpack.c.b16 %v360, %v356
    %v425 = vpack.c.b16 %v361, %v357
    %v426 = vpack.c.b16 %v362, %v358
    %491 = vmatpush.bf16.msra.mxu0 %v391
    %492 = vmatpush.bf16.msra.mxu0 %v387
    %493 = vmatpush.bf16.msra.mxu0 %v383
    %494 = vmatpush.bf16.msra.mxu0 %v379
    %495 = vmatpush.bf16.msra.mxu0 %v375
    %496 = vmatpush.bf16.msra.mxu0 %v371
    %497 = vmatpush.bf16.msra.mxu0 %v367
    %498 = vmatpush.bf16.msra.mxu0 %v363
    %499 = vmatmul.bf16.gmra.mxu0 %v95
    %v500 = vpop.f32.mrf.mxu0
    %v501 = vadd.f32 %v163, %v500
    %v502 = vpop.f32.mrf.mxu0
    %503 = vdwg.mxu0
    %504 = vmatpush.bf16.msra.mxu0 %v423
    %505 = vmatpush.bf16.msra.mxu0 %v419
    %506 = vmatpush.bf16.msra.mxu0 %v415
    %507 = vmatpush.bf16.msra.mxu0 %v411
    %508 = vmatpush.bf16.msra.mxu0 %v407
    %509 = vmatpush.bf16.msra.mxu0 %v403
    %510 = vmatpush.bf16.msra.mxu0 %v399
    %511 = vmatpush.bf16.msra.mxu0 %v395
    %512 = vmatmul.bf16.gmra.mxu0 %v96
    %v513 = vpop.f32.mrf.mxu0
    %v514 = vadd.f32 %v501, %v513
    %v515 = vpop.f32.mrf.mxu0
    %516 = vdwg.mxu0
    %517 = vmatpush.bf16.msra.mxu0 %v392
    %518 = vmatpush.bf16.msra.mxu0 %v388
    %519 = vmatpush.bf16.msra.mxu0 %v384
    %520 = vmatpush.bf16.msra.mxu0 %v380
    %521 = vmatpush.bf16.msra.mxu0 %v376
    %522 = vmatpush.bf16.msra.mxu0 %v372
    %523 = vmatpush.bf16.msra.mxu0 %v368
    %524 = vmatpush.bf16.msra.mxu0 %v364
    %525 = vmatmul.bf16.gmra.mxu0 %v95
    %v526 = vpop.f32.mrf.mxu0
    %v527 = vadd.f32 %v164, %v526
    %v528 = vpop.f32.mrf.mxu0
    %529 = vdwg.mxu0
    %530 = vmatpush.bf16.msra.mxu0 %v424
    %531 = vmatpush.bf16.msra.mxu0 %v420
    %532 = vmatpush.bf16.msra.mxu0 %v416
    %533 = vmatpush.bf16.msra.mxu0 %v412
    %534 = vmatpush.bf16.msra.mxu0 %v408
    %535 = vmatpush.bf16.msra.mxu0 %v404
    %536 = vmatpush.bf16.msra.mxu0 %v400
    %537 = vmatpush.bf16.msra.mxu0 %v396
    %538 = vmatmul.bf16.gmra.mxu0 %v96
    %v539 = vpop.f32.mrf.mxu0
    %v540 = vadd.f32 %v527, %v539
    %v541 = vpop.f32.mrf.mxu0
    %542 = vdwg.mxu0
    %543 = vmatpush.bf16.msra.mxu0 %v393
    %544 = vmatpush.bf16.msra.mxu0 %v389
    %545 = vmatpush.bf16.msra.mxu0 %v385
    %546 = vmatpush.bf16.msra.mxu0 %v381
    %547 = vmatpush.bf16.msra.mxu0 %v377
    %548 = vmatpush.bf16.msra.mxu0 %v373
    %549 = vmatpush.bf16.msra.mxu0 %v369
    %550 = vmatpush.bf16.msra.mxu0 %v365
    %551 = vmatmul.bf16.gmra.mxu0 %v95
    %v552 = vpop.f32.mrf.mxu0
    %v553 = vadd.f32 %v165, %v552
    %v554 = vpop.f32.mrf.mxu0
    %555 = vdwg.mxu0
    %556 = vmatpush.bf16.msra.mxu0 %v425
    %557 = vmatpush.bf16.msra.mxu0 %v421
    %558 = vmatpush.bf16.msra.mxu0 %v417
    %559 = vmatpush.bf16.msra.mxu0 %v413
    %560 = vmatpush.bf16.msra.mxu0 %v409
    %561 = vmatpush.bf16.msra.mxu0 %v405
    %562 = vmatpush.bf16.msra.mxu0 %v401
    %563 = vmatpush.bf16.msra.mxu0 %v397
    %564 = vmatmul.bf16.gmra.mxu0 %v96
    %v565 = vpop.f32.mrf.mxu0
    %v566 = vadd.f32 %v553, %v565
    %v567 = vpop.f32.mrf.mxu0
    %568 = vdwg.mxu0
    %569 = vmatpush.bf16.msra.mxu0 %v394
    %570 = vmatpush.bf16.msra.mxu0 %v390
    %571 = vmatpush.bf16.msra.mxu0 %v386
    %572 = vmatpush.bf16.msra.mxu0 %v382
    %573 = vmatpush.bf16.msra.mxu0 %v378
    %574 = vmatpush.bf16.msra.mxu0 %v374
    %575 = vmatpush.bf16.msra.mxu0 %v370
    %576 = vmatpush.bf16.msra.mxu0 %v366
    %577 = vmatmul.bf16.gmra.mxu0 %v95
    %v578 = vpop.f32.mrf.mxu0
    %v579 = vadd.f32 %v166, %v578
    %v580 = vpop.f32.mrf.mxu0
    %581 = vdwg.mxu0
    %582 = vmatpush.bf16.msra.mxu0 %v426
    %583 = vmatpush.bf16.msra.mxu0 %v422
    %584 = vmatpush.bf16.msra.mxu0 %v418
    %585 = vmatpush.bf16.msra.mxu0 %v414
    %586 = vmatpush.bf16.msra.mxu0 %v410
    %587 = vmatpush.bf16.msra.mxu0 %v406
    %588 = vmatpush.bf16.msra.mxu0 %v402
    %589 = vmatpush.bf16.msra.mxu0 %v398
    %590 = vmatmul.bf16.gmra.mxu0 %v96
    %v591 = vpop.f32.mrf.mxu0
    %v592 = vadd.f32 %v579, %v591
    %v593 = vpop.f32.mrf.mxu0
    %594 = vdwg.mxu0
    %v595 = vmax.f32 %v514, 0.0
    %v596 = vmax.f32 %v540, 0.0
    %v597 = vmax.f32 %v566, 0.0
    %v598 = vmax.f32 %v592, 0.0
    %v599 = vpack.c.bf16 %v595, %v595
    %v600 = vpack.c.bf16 %v596, %v596
    %v601 = vpack.c.bf16 %v597, %v597
    %v602 = vpack.c.bf16 %v598, %v598
    %v603 = vld [vmem:[%s5] sm:$0xf]
    %v604 = vld [vmem:[%s5 + $0x4] sm:$0xf]
    %v605 = vld [vmem:[%s5 + $0x8] sm:$0xf]
    %v606 = vld [vmem:[%s5 + $0xc] sm:$0xf]
    %v607 = vld [vmem:[%s5 + $0x10] sm:$0xf]
    %v608 = vld [vmem:[%s5 + $0x14] sm:$0xf]
    %v609 = vld [vmem:[%s5 + $0x18] sm:$0xf]
    %v610 = vld [vmem:[%s5 + $0x1c] sm:$0xf]
    %v611 = vld [vmem:[%s5 + $0x20] sm:$0xf]
    %v612 = vld [vmem:[%s5 + $0x24] sm:$0xf]
    %v613 = vld [vmem:[%s5 + $0x28] sm:$0xf]
    %v614 = vld [vmem:[%s5 + $0x2c] sm:$0xf]
    %v615 = vld [vmem:[%s5 + $0x30] sm:$0xf]
    %v616 = vld [vmem:[%s5 + $0x34] sm:$0xf]
    %v617 = vld [vmem:[%s5 + $0x38] sm:$0xf]
    %v618 = vld [vmem:[%s5 + $0x3c] sm:$0xf]
    %v619 = vld [vmem:[%s5 + $0x40] sm:$0xf]
    %v620 = vld [vmem:[%s5 + $0x44] sm:$0xf]
    %v621 = vld [vmem:[%s5 + $0x48] sm:$0xf]
    %v622 = vld [vmem:[%s5 + $0x4c] sm:$0xf]
    %v623 = vld [vmem:[%s5 + $0x50] sm:$0xf]
    %v624 = vld [vmem:[%s5 + $0x54] sm:$0xf]
    %v625 = vld [vmem:[%s5 + $0x58] sm:$0xf]
    %v626 = vld [vmem:[%s5 + $0x5c] sm:$0xf]
    %v627 = vld [vmem:[%s5 + $0x60] sm:$0xf]
    %v628 = vld [vmem:[%s5 + $0x64] sm:$0xf]
    %v629 = vld [vmem:[%s5 + $0x68] sm:$0xf]
    %v630 = vld [vmem:[%s5 + $0x6c] sm:$0xf]
    %v631 = vld [vmem:[%s5 + $0x70] sm:$0xf]
    %v632 = vld [vmem:[%s5 + $0x74] sm:$0xf]
    %v633 = vld [vmem:[%s5 + $0x78] sm:$0xf]
    %v634 = vld [vmem:[%s5 + $0x7c] sm:$0xf]
    %v635 = vld [vmem:[%s5 + $0x80] sm:$0xf]
    %v636 = vld [vmem:[%s5 + $0x84] sm:$0xf]
    %v637 = vld [vmem:[%s5 + $0x88] sm:$0xf]
    %v638 = vld [vmem:[%s5 + $0x8c] sm:$0xf]
    %v639 = vld [vmem:[%s5 + $0x90] sm:$0xf]
    %v640 = vld [vmem:[%s5 + $0x94] sm:$0xf]
    %v641 = vld [vmem:[%s5 + $0x98] sm:$0xf]
    %v642 = vld [vmem:[%s5 + $0x9c] sm:$0xf]
    %v643 = vld [vmem:[%s5 + $0xa0] sm:$0xf]
    %v644 = vld [vmem:[%s5 + $0xa4] sm:$0xf]
    %v645 = vld [vmem:[%s5 + $0xa8] sm:$0xf]
    %v646 = vld [vmem:[%s5 + $0xac] sm:$0xf]
    %v647 = vld [vmem:[%s5 + $0xb0] sm:$0xf]
    %v648 = vld [vmem:[%s5 + $0xb4] sm:$0xf]
    %v649 = vld [vmem:[%s5 + $0xb8] sm:$0xf]
    %v650 = vld [vmem:[%s5 + $0xbc] sm:$0xf]
    %v651 = vld [vmem:[%s5 + $0xc0] sm:$0xf]
    %v652 = vld [vmem:[%s5 + $0xc4] sm:$0xf]
    %v653 = vld [vmem:[%s5 + $0xc8] sm:$0xf]
    %v654 = vld [vmem:[%s5 + $0xcc] sm:$0xf]
    %v655 = vld [vmem:[%s5 + $0xd0] sm:$0xf]
    %v656 = vld [vmem:[%s5 + $0xd4] sm:$0xf]
    %v657 = vld [vmem:[%s5 + $0xd8] sm:$0xf]
    %v658 = vld [vmem:[%s5 + $0xdc] sm:$0xf]
    %v659 = vld [vmem:[%s5 + $0xe0] sm:$0xf]
    %v660 = vld [vmem:[%s5 + $0xe4] sm:$0xf]
    %v661 = vld [vmem:[%s5 + $0xe8] sm:$0xf]
    %v662 = vld [vmem:[%s5 + $0xec] sm:$0xf]
    %v663 = vld [vmem:[%s5 + $0xf0] sm:$0xf]
    %v664 = vld [vmem:[%s5 + $0xf4] sm:$0xf]
    %v665 = vld [vmem:[%s5 + $0xf8] sm:$0xf]
    %v666 = vld [vmem:[%s5 + $0xfc] sm:$0xf]
    %v667 = vld [vmem:[%s6] sm:$0x1]
    %v669 = vperm.slane %v667, 0
    %v735 = vunpack.c.l.b16 %v603
    %v736 = vunpack.c.l.b16 %v604
    %v737 = vunpack.c.l.b16 %v605
    %v738 = vunpack.c.l.b16 %v606
    %v739 = vunpack.c.l.b16 %v607
    %v740 = vunpack.c.l.b16 %v608
    %v741 = vunpack.c.l.b16 %v609
    %v742 = vunpack.c.l.b16 %v610
    %v743 = vunpack.c.l.b16 %v611
    %v744 = vunpack.c.l.b16 %v612
    %v745 = vunpack.c.l.b16 %v613
    %v746 = vunpack.c.l.b16 %v614
    %v747 = vunpack.c.l.b16 %v615
    %v748 = vunpack.c.l.b16 %v616
    %v749 = vunpack.c.l.b16 %v617
    %v750 = vunpack.c.l.b16 %v618
    %v751 = vunpack.c.l.b16 %v619
    %v752 = vunpack.c.l.b16 %v620
    %v753 = vunpack.c.l.b16 %v621
    %v754 = vunpack.c.l.b16 %v622
    %v755 = vunpack.c.l.b16 %v623
    %v756 = vunpack.c.l.b16 %v624
    %v757 = vunpack.c.l.b16 %v625
    %v758 = vunpack.c.l.b16 %v626
    %v759 = vunpack.c.l.b16 %v627
    %v760 = vunpack.c.l.b16 %v628
    %v761 = vunpack.c.l.b16 %v629
    %v762 = vunpack.c.l.b16 %v630
    %v763 = vunpack.c.l.b16 %v631
    %v764 = vunpack.c.l.b16 %v632
    %v765 = vunpack.c.l.b16 %v633
    %v766 = vunpack.c.l.b16 %v634
    %v767 = vunpack.c.l.b16 %v635
    %v768 = vunpack.c.l.b16 %v636
    %v769 = vunpack.c.l.b16 %v637
    %v770 = vunpack.c.l.b16 %v638
    %v771 = vunpack.c.l.b16 %v639
    %v772 = vunpack.c.l.b16 %v640
    %v773 = vunpack.c.l.b16 %v641
    %v774 = vunpack.c.l.b16 %v642
    %v775 = vunpack.c.l.b16 %v643
    %v776 = vunpack.c.l.b16 %v644
    %v777 = vunpack.c.l.b16 %v645
    %v778 = vunpack.c.l.b16 %v646
    %v779 = vunpack.c.l.b16 %v647
    %v780 = vunpack.c.l.b16 %v648
    %v781 = vunpack.c.l.b16 %v649
    %v782 = vunpack.c.l.b16 %v650
    %v783 = vunpack.c.l.b16 %v651
    %v784 = vunpack.c.l.b16 %v652
    %v785 = vunpack.c.l.b16 %v653
    %v786 = vunpack.c.l.b16 %v654
    %v787 = vunpack.c.l.b16 %v655
    %v788 = vunpack.c.l.b16 %v656
    %v789 = vunpack.c.l.b16 %v657
    %v790 = vunpack.c.l.b16 %v658
    %v791 = vunpack.c.l.b16 %v659
    %v792 = vunpack.c.l.b16 %v660
    %v793 = vunpack.c.l.b16 %v661
    %v794 = vunpack.c.l.b16 %v662
    %v795 = vunpack.c.l.b16 %v663
    %v796 = vunpack.c.l.b16 %v664
    %v797 = vunpack.c.l.b16 %v665
    %v798 = vunpack.c.l.b16 %v666
    %v799 = vpack.c.b16 %v736, %v735
    %v800 = vpack.c.b16 %v738, %v737
    %v801 = vpack.c.b16 %v740, %v739
    %v802 = vpack.c.b16 %v742, %v741
    %v803 = vpack.c.b16 %v744, %v743
    %v804 = vpack.c.b16 %v746, %v745
    %v805 = vpack.c.b16 %v748, %v747
    %v806 = vpack.c.b16 %v750, %v749
    %v807 = vpack.c.b16 %v752, %v751
    %v808 = vpack.c.b16 %v754, %v753
    %v809 = vpack.c.b16 %v756, %v755
    %v810 = vpack.c.b16 %v758, %v757
    %v811 = vpack.c.b16 %v760, %v759
    %v812 = vpack.c.b16 %v762, %v761
    %v813 = vpack.c.b16 %v764, %v763
    %v814 = vpack.c.b16 %v766, %v765
    %v815 = vpack.c.b16 %v768, %v767
    %v816 = vpack.c.b16 %v770, %v769
    %v817 = vpack.c.b16 %v772, %v771
    %v818 = vpack.c.b16 %v774, %v773
    %v819 = vpack.c.b16 %v776, %v775
    %v820 = vpack.c.b16 %v778, %v777
    %v821 = vpack.c.b16 %v780, %v779
    %v822 = vpack.c.b16 %v782, %v781
    %v823 = vpack.c.b16 %v784, %v783
    %v824 = vpack.c.b16 %v786, %v785
    %v825 = vpack.c.b16 %v788, %v787
    %v826 = vpack.c.b16 %v790, %v789
    %v827 = vpack.c.b16 %v792, %v791
    %v828 = vpack.c.b16 %v794, %v793
    %v829 = vpack.c.b16 %v796, %v795
    %v830 = vpack.c.b16 %v798, %v797
    %863 = vmatpush.bf16.msra.mxu0 %v806
    %864 = vmatpush.bf16.msra.mxu0 %v805
    %865 = vmatpush.bf16.msra.mxu0 %v804
    %866 = vmatpush.bf16.msra.mxu0 %v803
    %867 = vmatpush.bf16.msra.mxu0 %v802
    %868 = vmatpush.bf16.msra.mxu0 %v801
    %869 = vmatpush.bf16.msra.mxu0 %v800
    %870 = vmatpush.bf16.msra.mxu0 %v799
    %871 = vmatmul.bf16.gmra.mxu0 %v599
    %v872 = vpop.f32.mrf.mxu0
    %v873 = vadd.f32 %v669, %v872
    %v874 = vpop.f32.mrf.mxu0
    %875 = vdwg.mxu0
    %876 = vmatpush.bf16.msra.mxu0 %v814
    %877 = vmatpush.bf16.msra.mxu0 %v813
    %878 = vmatpush.bf16.msra.mxu0 %v812
    %879 = vmatpush.bf16.msra.mxu0 %v811
    %880 = vmatpush.bf16.msra.mxu0 %v810
    %881 = vmatpush.bf16.msra.mxu0 %v809
    %882 = vmatpush.bf16.msra.mxu0 %v808
    %883 = vmatpush.bf16.msra.mxu0 %v807
    %884 = vmatmul.bf16.gmra.mxu0 %v600
    %v885 = vpop.f32.mrf.mxu0
    %v886 = vadd.f32 %v873, %v885
    %v887 = vpop.f32.mrf.mxu0
    %888 = vdwg.mxu0
    %889 = vmatpush.bf16.msra.mxu0 %v822
    %890 = vmatpush.bf16.msra.mxu0 %v821
    %891 = vmatpush.bf16.msra.mxu0 %v820
    %892 = vmatpush.bf16.msra.mxu0 %v819
    %893 = vmatpush.bf16.msra.mxu0 %v818
    %894 = vmatpush.bf16.msra.mxu0 %v817
    %895 = vmatpush.bf16.msra.mxu0 %v816
    %896 = vmatpush.bf16.msra.mxu0 %v815
    %897 = vmatmul.bf16.gmra.mxu0 %v601
    %v898 = vpop.f32.mrf.mxu0
    %v899 = vadd.f32 %v886, %v898
    %v900 = vpop.f32.mrf.mxu0
    %901 = vdwg.mxu0
    %902 = vmatpush.bf16.msra.mxu0 %v830
    %903 = vmatpush.bf16.msra.mxu0 %v829
    %904 = vmatpush.bf16.msra.mxu0 %v828
    %905 = vmatpush.bf16.msra.mxu0 %v827
    %906 = vmatpush.bf16.msra.mxu0 %v826
    %907 = vmatpush.bf16.msra.mxu0 %v825
    %908 = vmatpush.bf16.msra.mxu0 %v824
    %909 = vmatpush.bf16.msra.mxu0 %v823
    %910 = vmatmul.bf16.gmra.mxu0 %v602
    %v911 = vpop.f32.mrf.mxu0
    %v912 = vadd.f32 %v899, %v911
    %v913 = vpop.f32.mrf.mxu0
    %914 = vdwg.mxu0
    %vm915 = vcmask 31744
    %916 = vst.msk [vmem:[%s7] sm:$0xff] %vm915, %v912
    // Predicated region
    $region34: #{meta_learner_forward.1} parent=1 // pred_check
      _
    $region35: #{meta_learner_forward.1} parent=1 // pred_check_branch
      %918 = sbr.rel (0) target = $region37
    $region36: #{meta_learner_forward.1} parent=1 // pred_region
      _
    $region37: #{meta_learner_forward.1} parent=1 // pred_fallthru
      _
    // Predicated region
    $region38: #{meta_learner_forward.1} parent=1 // pred_check
      _
    $region39: #{meta_learner_forward.1} parent=1 // pred_check_branch
      %920 = sbr.rel (0) target = $region41
    $region40: #{meta_learner_forward.1} parent=1 // pred_region
      _
    $region41: #{meta_learner_forward.1} parent=1 // pred_fallthru
      _
    %921 = vsyncpa [#allocation3], 1

</llo_original>
